<compile_context>
chip_gen: v5e
topology: v5e:2x2
jax: 0.10.0
libtpu: 0.0.40
codegen_flags: <defaults>
</compile_context>

<pallas_src>
import jax
import jax.numpy as jnp
from jax.experimental import pallas as pl
from jax.experimental.pallas import tpu as pltpu

CTX = 3  # 3-token context, matching the 3*embed_dim flatten in the module


def _round_up(x, m):
    return (x + m - 1) // m * m


def fused_embed_fnn_kernel(lane_ref, t_ref, w2_ref, b2_ref, o_ref):
    # lane_ref: (BM, 3) int32  -- per-row target lanes, lane = k*V + tok[:, k]
    # t_ref:    (Kp, Ep) f32   -- stacked emb @ w1[k] table, b1 folded in
    # w2_ref:   (Ep, Cp) f32
    # b2_ref:   (1, Cp) f32
    # o_ref:    (BM, Cp) f32
    bm = o_ref.shape[0]
    kp = t_ref.shape[0]

    lanes = lane_ref[...]                                          # (BM, 3)
    lane_ids = jax.lax.broadcasted_iota(jnp.int32, (bm, kp), 1)    # (BM, Kp)

    # Combined one-hot over all 3 context positions (3 VPU compares, OR'd).
    hit = lane_ids == lanes[:, 0:1]
    for k in range(1, CTX):
        hit = jnp.logical_or(hit, lane_ids == lanes[:, k:k + 1])
    onehot = hit.astype(jnp.float32)                               # (BM, Kp)

    # Layer 1 (gather + Linear + b1) as a single lane-dense MXU dot.
    pre = jnp.dot(onehot, t_ref[...], preferred_element_type=jnp.float32)
    hidden = jnp.tanh(pre)                                         # (BM, Ep)

    # Layer 2.
    logits = jnp.dot(hidden, w2_ref[...], preferred_element_type=jnp.float32)
    o_ref[...] = (logits + b2_ref[...]).astype(o_ref.dtype)


def pad_and_pack_params(embed_table, w1, b1, w2, b2):
    """One-time host-side prep: fold embedding + layer-1 into one table.

    T[k*V + t, :] = emb[t] @ w1[k], with b1 added to the k == 0 segment
    (each input row selects exactly one lane of that segment, so b1 is added
    exactly once).  Everything zero-padded to lane-friendly widths.
    """
    V, E = embed_table.shape
    C = w2.shape[1]
    assert w1.shape == (CTX * E, E)

    Kp = _round_up(CTX * V, 128)
    Ep = _round_up(E, 128)
    Cp = _round_up(C, 128)

    w1_k = w1.reshape(CTX, E, E)
    t = jnp.einsum("ve,kef->kvf", embed_table, w1_k)       # (CTX, V, E)
    t = t.at[0].add(b1[None, :])                           # fold b1 into seg 0
    table = jnp.zeros((Kp, Ep), jnp.float32).at[:CTX * V, :E].set(
        t.reshape(CTX * V, E))

    w2_p = jnp.zeros((Ep, Cp), jnp.float32).at[:E, :C].set(w2)
    b2_p = jnp.zeros((1, Cp), jnp.float32).at[0, :C].set(b2)
    return table, w2_p, b2_p


def fused_forward(tokens, vocab_size, table, w2_p, b2_p, n_class):
    """Single pallas_call: embedding gather + Linear + tanh + Linear."""
    B = tokens.shape[0]
    kp, ep = table.shape
    cp = w2_p.shape[1]

    # Batch tiling: for B >= 16 split the batch so the "parallel" grid has
    # >= 2 steps and both v7x TensorCores get work; cap the tile at 256 rows.
    if B >= 16:
        bm = min(256, _round_up(pl.cdiv(B, 2), 8))
    else:
        bm = _round_up(B, 8)
    b_pad = _round_up(B, bm)
    if b_pad != B:
        tokens = jnp.zeros((b_pad, CTX), jnp.int32).at[:B].set(tokens)

    # Per-position lane index (k*V + tok); tiny (B,3) int32 op fused in the
    # caller, padded rows map to valid lanes and are sliced off below.
    lanes = tokens.astype(jnp.int32) + (
        jnp.arange(CTX, dtype=jnp.int32)[None, :] * vocab_size)

    out = pl.pallas_call(
        fused_embed_fnn_kernel,
        out_shape=jax.ShapeDtypeStruct((b_pad, cp), jnp.float32),
        grid=(b_pad // bm,),
        in_specs=[
            pl.BlockSpec((bm, CTX), lambda i: (i, 0)),   # lane ids (tiny)
            pl.BlockSpec((kp, ep), lambda i: (0, 0)),    # folded emb@w1 table
            pl.BlockSpec((ep, cp), lambda i: (0, 0)),    # w2
            pl.BlockSpec((1, cp), lambda i: (0, 0)),     # b2
        ],
        out_specs=pl.BlockSpec((bm, cp), lambda i: (i, 0)),
        compiler_params=pltpu.CompilerParams(
            dimension_semantics=("parallel",)),
    )(lanes, table, w2_p, b2_p)

    # Slice padded rows / lanes back to the logical logits outside the kernel.
    return out[:B, :n_class]


if __name__ == "__main__":
    # BaseModel(vocab, embed_dim=50, n_class=3) with a 3-token context.
    vocab_size = 20
    embed_dim = 50
    n_class = 3

    key = jax.random.PRNGKey(0)
    k_emb, k_w1, k_b1, k_w2, k_b2, k_tok = jax.random.split(key, 6)

    # Deterministic synthetic parameters (w1/w2 stored input-major, i.e. the
    # transpose of nn.Linear.weight, so forward is x @ w + b).
    embed_table = jax.random.normal(k_emb, (vocab_size, embed_dim), jnp.float32)
    w1 = jax.random.normal(k_w1, (CTX * embed_dim, embed_dim), jnp.float32) * 0.05
    b1 = jax.random.normal(k_b1, (embed_dim,), jnp.float32) * 0.05
    w2 = jax.random.normal(k_w2, (embed_dim, n_class), jnp.float32) * 0.05
    b2 = jax.random.normal(k_b2, (n_class,), jnp.float32) * 0.05

    packed = pad_and_pack_params(embed_table, w1, b1, w2, b2)

    def reference(tok):
        xf = jnp.take(embed_table, tok, axis=0).reshape(tok.shape[0], -1)
        return jnp.tanh(xf @ w1 + b1) @ w2 + b2

    # batch=8 matches the toy spec; batch=32 exercises the multi-step
    # (two-TensorCore) grid path.
    for batch in (8, 32):
        tok = jax.random.randint(jax.random.fold_in(k_tok, batch),
                                 (batch, CTX), 0, vocab_size, jnp.int32)
        out = fused_forward(tok, vocab_size, *packed, n_class)
        out = jax.block_until_ready(out)
        ref = reference(tok)
        assert out.shape == (batch, n_class)
        # Tolerance per review: the TPU MXU handles f32 dots with (possibly
        # bf16-pass) reduced-precision operands by default, and the folded-
        # table path rounds differently from the reference's x @ w1 path, so
        # compare at a few-e-3 instead of asserting bitwise-f32 agreement.
        assert jnp.allclose(out, ref, atol=5e-3, rtol=5e-3)

    print("KERNEL_OK")
</pallas_src>

<mosaic_0001>
module attributes {stable_mosaic.version = 11 : i64} {
  func.func @fused_embed_fnn_kernel(%arg0: i32, %arg1: memref<8x3xi32, #tpu.memory_space<vmem>>, %arg2: memref<128x128xf32, #tpu.memory_space<vmem>>, %arg3: memref<128x128xf32, #tpu.memory_space<vmem>>, %arg4: memref<1x128xf32, #tpu.memory_space<vmem>>, %arg5: memref<8x128xf32, #tpu.memory_space<vmem>>) attributes {dimension_semantics = [#tpu.dimension_semantics<parallel>], iteration_bounds = array<i64: 1>, scalar_prefetch = 0 : i64, scratch_operands = 0 : i64, tpu.core_type = #tpu.core_type<tc>, window_params = [{transform_indices = @transform_0, window_bounds = array<i64: 8, 3>}, {pipeline_mode = #tpu.pipeline_mode<synchronous>, transform_indices = @transform_1, window_bounds = array<i64: 128, 128>}, {pipeline_mode = #tpu.pipeline_mode<synchronous>, transform_indices = @transform_2, window_bounds = array<i64: 128, 128>}, {pipeline_mode = #tpu.pipeline_mode<synchronous>, transform_indices = @transform_3, window_bounds = array<i64: 1, 128>}, {transform_indices = @transform_4, window_bounds = array<i64: 8, 128>}]} {
    %c0 = arith.constant 0 : index
    %c0_0 = arith.constant 0 : index
    %0 = vector.load %arg1[%c0, %c0_0] : memref<8x3xi32, #tpu.memory_space<vmem>>, vector<8x3xi32>
    %1 = tpu.iota {dimensions = array<i32: 1>} : vector<8x128xi32>
    %2 = vector.extract_strided_slice %0 {offsets = [0, 0], sizes = [8, 1], strides = [1, 1]} : vector<8x3xi32> to vector<8x1xi32>
    %3 = vector.broadcast %2 : vector<8x1xi32> to vector<8x128xi32>
    %4 = arith.cmpi eq, %1, %3 : vector<8x128xi32>
    %5 = vector.extract_strided_slice %0 {offsets = [0, 1], sizes = [8, 1], strides = [1, 1]} : vector<8x3xi32> to vector<8x1xi32>
    %6 = vector.broadcast %5 : vector<8x1xi32> to vector<8x128xi32>
    %7 = arith.cmpi eq, %1, %6 : vector<8x128xi32>
    %8 = arith.ori %4, %7 : vector<8x128xi1>
    %9 = vector.extract_strided_slice %0 {offsets = [0, 2], sizes = [8, 1], strides = [1, 1]} : vector<8x3xi32> to vector<8x1xi32>
    %10 = vector.broadcast %9 : vector<8x1xi32> to vector<8x128xi32>
    %11 = arith.cmpi eq, %1, %10 : vector<8x128xi32>
    %12 = arith.ori %8, %11 : vector<8x128xi1>
    %13 = arith.extui %12 : vector<8x128xi1> to vector<8x128xi32>
    %14 = arith.sitofp %13 : vector<8x128xi32> to vector<8x128xf32>
    %c0_1 = arith.constant 0 : index
    %c0_2 = arith.constant 0 : index
    %15 = vector.load %arg2[%c0_1, %c0_2] : memref<128x128xf32, #tpu.memory_space<vmem>>, vector<128x128xf32>
    %cst = arith.constant dense<0.000000e+00> : vector<8x128xf32>
    %16 = tpu.matmul %14, %15, %cst {dimension_numbers = #tpu.dot_dimension_numbers<[1], [0], [0], [1], [0, 0, 1, 1], [], []>} : vector<8x128xf32>, vector<128x128xf32>, vector<8x128xf32> -> vector<8x128xf32>
    %17 = math.tanh %16 : vector<8x128xf32>
    %c0_3 = arith.constant 0 : index
    %c0_4 = arith.constant 0 : index
    %18 = vector.load %arg3[%c0_3, %c0_4] : memref<128x128xf32, #tpu.memory_space<vmem>>, vector<128x128xf32>
    %cst_5 = arith.constant dense<0.000000e+00> : vector<8x128xf32>
    %19 = tpu.matmul %17, %18, %cst_5 {dimension_numbers = #tpu.dot_dimension_numbers<[1], [0], [0], [1], [0, 0, 1, 1], [], []>} : vector<8x128xf32>, vector<128x128xf32>, vector<8x128xf32> -> vector<8x128xf32>
    %c0_6 = arith.constant 0 : index
    %c0_7 = arith.constant 0 : index
    %20 = vector.load %arg4[%c0_6, %c0_7] : memref<1x128xf32, #tpu.memory_space<vmem>>, vector<1x128xf32>
    %21 = vector.broadcast %20 : vector<1x128xf32> to vector<8x128xf32>
    %22 = arith.addf %19, %21 : vector<8x128xf32>
    %c0_8 = arith.constant 0 : index
    %c0_9 = arith.constant 0 : index
    %23 = vector.load %arg5[%c0_8, %c0_9] : memref<8x128xf32, #tpu.memory_space<vmem>>, vector<8x128xf32>
    tpu.vector_store %arg5[%c0_8, %c0_9], %22 {strides = array<i32>} : memref<8x128xf32, #tpu.memory_space<vmem>>, vector<8x128xf32>,
    return
  }
  func.func @transform_0(%arg0: i32) -> (i32, i32) {
    %c0_i32 = arith.constant 0 : i32
    %c0_i32_0 = arith.constant 0 : i32
    return %arg0, %c0_i32 : i32, i32
  }
  func.func @transform_1(%arg0: i32) -> (i32, i32) {
    %c0_i32 = arith.constant 0 : i32
    %c0_i32_0 = arith.constant 0 : i32
    %c0_i32_1 = arith.constant 0 : i32
    return %c0_i32, %c0_i32_0 : i32, i32
  }
  func.func @transform_2(%arg0: i32) -> (i32, i32) {
    %c0_i32 = arith.constant 0 : i32
    %c0_i32_0 = arith.constant 0 : i32
    %c0_i32_1 = arith.constant 0 : i32
    return %c0_i32, %c0_i32_0 : i32, i32
  }
  func.func @transform_3(%arg0: i32) -> (i32, i32) {
    %c0_i32 = arith.constant 0 : i32
    %c0_i32_0 = arith.constant 0 : i32
    %c0_i32_1 = arith.constant 0 : i32
    return %c0_i32, %c0_i32_0 : i32, i32
  }
  func.func @transform_4(%arg0: i32) -> (i32, i32) {
    %c0_i32 = arith.constant 0 : i32
    %c0_i32_0 = arith.constant 0 : i32
    return %arg0, %c0_i32 : i32, i32
  }
}

</mosaic_0001>

<llo_original>
// kernel: tpu_custom_call.1
$region0: #{tpu_custom_call.1}
  #allocation0 [shape = 'u32[]', space=smem, size = 0x4, offset = 0x4, fixed_abs, tag = 'smem constant byte address 0x4 - core index']
  #allocation1 [shape = 'u32[72,128]{1,0:T(1,128)}', space=vmem, size = 0x9000, scoped, tag = 'internal scratch']
  %s0 = inlined_call_operand.vmem [shape: s32[8,3], index: 0, kind: input, shape index: {}]
  %s1 = inlined_call_operand.hbm [shape: f32[128,128], index: 1, kind: input, shape index: {}]
  %s2 = inlined_call_operand.hbm [shape: f32[128,128], index: 2, kind: input, shape index: {}]
  %s3 = inlined_call_operand.vmem [shape: f32[1,128], index: 3, kind: input, shape index: {}]
  %s4 = inlined_call_operand.hbm [shape: f32[8,128], index: 4, kind: output, shape index: {}]
  %s5 = sld [smem:[#allocation0]]
  $region34: #{tpu_custom_call.1} parent=0
    _
  %s7 = ssub.s32 1, %s5
  %s8 = scalar_select 0, %s7, %s5
  $region1: #{tpu_custom_call.1} parent=0
    #allocation2 [shape = 'u8[65536]{0}', space=vmem, size = 0x10000, scoped, tag = 'input window, operand 1, single buffered']
    #allocation3 [shape = 's32[1]{0}', space=sflag, size = 0x4, scoped, tag = 'scoped memory for tpu_custom_call.1']
    #allocation4 [shape = 's32[1]{0}', space=sflag, size = 0x4, scoped, tag = 'scoped memory for tpu_custom_call.1']
    #allocation5 [shape = 'u8[65536]{0}', space=vmem, size = 0x10000, scoped, tag = 'input window, operand 2, single buffered']
    #allocation6 [shape = 's32[1]{0}', space=sflag, size = 0x4, scoped, tag = 'scoped memory for tpu_custom_call.1']
    #allocation7 [shape = 'u8[4096]{0}', space=vmem, size = 0x1000, scoped, tag = 'output window, operand 0, single buffered']
    %9 = vsyncpa [#allocation3], 0
    %10 = vsyncpa [#allocation6], 0
    %11 = vsyncpa [#allocation4], 0
    // Predicated region
    $region2: #{tpu_custom_call.1} parent=1 // pred_check
      _
    $region3: #{tpu_custom_call.1} parent=1 // pred_check_branch
      %13 = sbr.rel (0) target = $region5
    $region4: #{tpu_custom_call.1} parent=1 // pred_region
      _
    $region5: #{tpu_custom_call.1} parent=1 // pred_fallthru
      _
    // Predicated region
    $region6: #{tpu_custom_call.1} parent=1 // pred_check
      _
    $region7: #{tpu_custom_call.1} parent=1 // pred_check_branch
      %15 = sbr.rel (0) target = $region9
    $region8: #{tpu_custom_call.1} parent=1 // pred_region
      %17 = vsyncadd [#allocation3], 0
      %s18 = sshll.u32 %s1, 4
      %s19 = int_to_ptr.hbm [resolvable:$true] %s18
      %s20 = sshll.u32 [#allocation2], 4
      %s21 = int_to_ptr.vmem [resolvable:$true] %s20
      %26 = dma.hbm_to_vmem [thread:$0]  %s19, 2048, %s21, [#allocation3], 128, 128, 8
    $region9: #{tpu_custom_call.1} parent=1 // pred_fallthru
      _
    // Predicated region
    $region10: #{tpu_custom_call.1} parent=1 // pred_check
      _
    $region11: #{tpu_custom_call.1} parent=1 // pred_check_branch
      %28 = sbr.rel (0) target = $region13
    $region12: #{tpu_custom_call.1} parent=1 // pred_region
      %30 = vsyncadd [#allocation6], 0
      %s31 = sshll.u32 %s2, 4
      %s32 = int_to_ptr.hbm [resolvable:$true] %s31
      %s33 = sshll.u32 [#allocation5], 4
      %s34 = int_to_ptr.vmem [resolvable:$true] %s33
      %39 = dma.hbm_to_vmem [thread:$0]  %s32, 2048, %s34, [#allocation6], 128, 128, 8
    $region13: #{tpu_custom_call.1} parent=1 // pred_fallthru
      _
    // Predicated region
    $region14: #{tpu_custom_call.1} parent=1 // pred_check
      _
    $region15: #{tpu_custom_call.1} parent=1 // pred_check_branch
      %41 = sbr.rel (0) target = $region17
    $region16: #{tpu_custom_call.1} parent=1 // pred_region
      _
    $region17: #{tpu_custom_call.1} parent=1 // pred_fallthru
      _
    // Predicated region
    $region18: #{tpu_custom_call.1} parent=1 // pred_check
      _
    $region19: #{tpu_custom_call.1} parent=1 // pred_check_branch
      %43 = sbr.rel (0) target = $region21
    $region20: #{tpu_custom_call.1} parent=1 // pred_region
      %45 = dma.done [#allocation3], 2048
    $region21: #{tpu_custom_call.1} parent=1 // pred_fallthru
      _
    // Predicated region
    $region22: #{tpu_custom_call.1} parent=1 // pred_check
      _
    $region23: #{tpu_custom_call.1} parent=1 // pred_check_branch
      %47 = sbr.rel (0) target = $region25
    $region24: #{tpu_custom_call.1} parent=1 // pred_region
      %49 = dma.done [#allocation6], 2048
    $region25: #{tpu_custom_call.1} parent=1 // pred_fallthru
      _
    %v50 = vld [vmem:[%s0] sm:$0xff]
    %v51 = vlaneseq
    %v52 = vand.u32 %v51, 127
    %53 = vset.pattern.permute.xlu0 0
    %54 = vperm.xlu0 %53, %v50
    %v55 = vpop.permute.xlu0 %54
    %vm56 = vcmp.eq.s32.totalorder %v52, %v55
    %57 = vset.pattern.permute.xlu0 1
    %58 = vperm.xlu0 %57, %v50
    %v59 = vpop.permute.xlu0 %58
    %vm60 = vcmp.eq.s32.totalorder %v52, %v59
    %vm61 = vmor %vm56, %vm60
    %62 = vset.pattern.permute.xlu0 2
    %63 = vperm.xlu0 %62, %v50
    %v64 = vpop.permute.xlu0 %63
    %vm65 = vcmp.eq.s32.totalorder %v52, %v64
    %vm66 = vmor %vm61, %vm65
    %v67 = vsel %vm66, 1, 0
    %v68 = vcvt.s32.f32 %v67
    %v69 = vld [vmem:[#allocation2] sm:$0xff]
    %v70 = vld [vmem:[#allocation2 + $0x8] sm:$0xff]
    %v71 = vld [vmem:[#allocation2 + $0x10] sm:$0xff]
    %v72 = vld [vmem:[#allocation2 + $0x18] sm:$0xff]
    %v73 = vld [vmem:[#allocation2 + $0x20] sm:$0xff]
    %v74 = vld [vmem:[#allocation2 + $0x28] sm:$0xff]
    %v75 = vld [vmem:[#allocation2 + $0x30] sm:$0xff]
    %v76 = vld [vmem:[#allocation2 + $0x38] sm:$0xff]
    %v77 = vld [vmem:[#allocation2 + $0x40] sm:$0xff]
    %v78 = vld [vmem:[#allocation2 + $0x48] sm:$0xff]
    %v79 = vld [vmem:[#allocation2 + $0x50] sm:$0xff]
    %v80 = vld [vmem:[#allocation2 + $0x58] sm:$0xff]
    %v81 = vld [vmem:[#allocation2 + $0x60] sm:$0xff]
    %v82 = vld [vmem:[#allocation2 + $0x68] sm:$0xff]
    %v83 = vld [vmem:[#allocation2 + $0x70] sm:$0xff]
    %v84 = vld [vmem:[#allocation2 + $0x78] sm:$0xff]
    %85 = vmatpush.msra.mxu0 %v84
    %86 = vmatpush.msra.mxu0 %v83
    %87 = vmatpush.msra.mxu0 %v82
    %88 = vmatpush.msra.mxu0 %v81
    %89 = vmatpush.msra.mxu0 %v80
    %90 = vmatpush.msra.mxu0 %v79
    %91 = vmatpush.msra.mxu0 %v78
    %92 = vmatpush.msra.mxu0 %v77
    %93 = vmatpush.msra.mxu0 %v76
    %94 = vmatpush.msra.mxu0 %v75
    %95 = vmatpush.msra.mxu0 %v74
    %96 = vmatpush.msra.mxu0 %v73
    %97 = vmatpush.msra.mxu0 %v72
    %98 = vmatpush.msra.mxu0 %v71
    %99 = vmatpush.msra.mxu0 %v70
    %100 = vmatpush.msra.mxu0 %v69
    %101 = vmatmul.f32.gmra.mxu0 %v68
    %v102 = vpop.f32.mrf.mxu0
    %v103 = vadd.f32 0.0, %v102
    %104 = vdwg.mxu0
    %v105 = vtanh.pop %v103
    %v106 = vld [vmem:[#allocation5] sm:$0xff]
    %v107 = vld [vmem:[#allocation5 + $0x8] sm:$0xff]
    %v108 = vld [vmem:[#allocation5 + $0x10] sm:$0xff]
    %v109 = vld [vmem:[#allocation5 + $0x18] sm:$0xff]
    %v110 = vld [vmem:[#allocation5 + $0x20] sm:$0xff]
    %v111 = vld [vmem:[#allocation5 + $0x28] sm:$0xff]
    %v112 = vld [vmem:[#allocation5 + $0x30] sm:$0xff]
    %v113 = vld [vmem:[#allocation5 + $0x38] sm:$0xff]
    %v114 = vld [vmem:[#allocation5 + $0x40] sm:$0xff]
    %v115 = vld [vmem:[#allocation5 + $0x48] sm:$0xff]
    %v116 = vld [vmem:[#allocation5 + $0x50] sm:$0xff]
    %v117 = vld [vmem:[#allocation5 + $0x58] sm:$0xff]
    %v118 = vld [vmem:[#allocation5 + $0x60] sm:$0xff]
    %v119 = vld [vmem:[#allocation5 + $0x68] sm:$0xff]
    %v120 = vld [vmem:[#allocation5 + $0x70] sm:$0xff]
    %v121 = vld [vmem:[#allocation5 + $0x78] sm:$0xff]
    %v122 = vld [vmem:[%s3] sm:$0x1]
    %v124 = vperm.slane %v122, 0
    %126 = vmatpush.msra.mxu0 %v121
    %127 = vmatpush.msra.mxu0 %v120
    %128 = vmatpush.msra.mxu0 %v119
    %129 = vmatpush.msra.mxu0 %v118
    %130 = vmatpush.msra.mxu0 %v117
    %131 = vmatpush.msra.mxu0 %v116
    %132 = vmatpush.msra.mxu0 %v115
    %133 = vmatpush.msra.mxu0 %v114
    %134 = vmatpush.msra.mxu0 %v113
    %135 = vmatpush.msra.mxu0 %v112
    %136 = vmatpush.msra.mxu0 %v111
    %137 = vmatpush.msra.mxu0 %v110
    %138 = vmatpush.msra.mxu0 %v109
    %139 = vmatpush.msra.mxu0 %v108
    %140 = vmatpush.msra.mxu0 %v107
    %141 = vmatpush.msra.mxu0 %v106
    %142 = vmatmul.f32.gmra.mxu0 %v105
    %v143 = vpop.f32.mrf.mxu0
    %v144 = vadd.f32 %v124, %v143
    %145 = vdwg.mxu0
    %146 = vst [vmem:[#allocation7] sm:$0xff] %v144
    // Predicated region
    $region26: #{tpu_custom_call.1} parent=1 // pred_check
      _
    $region27: #{tpu_custom_call.1} parent=1 // pred_check_branch
      %148 = sbr.rel (0) target = $region29
    $region28: #{tpu_custom_call.1} parent=1 // pred_region
      %150 = vsyncadd [#allocation4], 0
      %s152 = sshll.u32 [#allocation7], 4
      %s153 = int_to_ptr.vmem [resolvable:$true] %s152
      %s154 = sshll.u32 %s4, 4
      %s155 = int_to_ptr.hbm [resolvable:$true] %s154
      %157 = dma.vmem_to_hbm [thread:$0]  %s153, 128, %s155, [#allocation4]
    $region29: #{tpu_custom_call.1} parent=1 // pred_fallthru
      _
    // Predicated region
    $region30: #{tpu_custom_call.1} parent=1 // pred_check
      _
    $region31: #{tpu_custom_call.1} parent=1 // pred_check_branch
      %159 = sbr.rel (0) target = $region33
    $region32: #{tpu_custom_call.1} parent=1 // pred_region
      %161 = dma.done [#allocation4], 128
    $region33: #{tpu_custom_call.1} parent=1 // pred_fallthru
      _
    %162 = vsyncpa [#allocation3], 1
    %163 = vsyncpa [#allocation6], 1
    %164 = vsyncpa [#allocation4], 1

</llo_original>
